<compile_context>
chip_gen: v7x
topology: tpu7x:2x2x1
jax: 0.10.0
libtpu: 0.0.40
codegen_flags: <defaults>
</compile_context>

<pallas_src>
import math

import jax
import jax.numpy as jnp
from jax import lax
from jax.experimental import pallas as pl
from jax.experimental.pallas import tpu as pltpu


def _make_pe_add_kernel(d_model):
    neg_log_base_over_d = -math.log(10000.0) / d_model
    d_model_f = float(d_model)

    def kernel(x_ref, o_ref):
        ts, bd = x_ref.shape  # (seq_tile, batch * d_model), static block shape

        # Per-lane quantities (constant across rows).  lane = b*D + d.
        lane = lax.broadcasted_iota(jnp.int32, (1, bd), 1).astype(jnp.float32)
        d_idx = lane - jnp.floor(lane / d_model_f) * d_model_f    # d = lane mod D (exact in f32)
        parity = d_idx - jnp.floor(d_idx * 0.5) * 2.0             # d mod 2
        freq = jnp.exp((d_idx - parity) * neg_log_base_over_d)    # exp(-(2*(d//2)) * ln(1e4)/D)
        phase = parity * (math.pi / 2.0)                          # sin(a + pi/2) == cos(a)

        # Per-row global sequence position for this grid step.
        row0 = pl.program_id(0) * ts
        pos = (row0 + lax.broadcasted_iota(jnp.int32, (ts, 1), 0)).astype(jnp.float32)

        pe = jnp.sin(pos * freq + phase)                          # (ts, bd) sinusoid
        o_ref[...] = (x_ref[...].astype(jnp.float32) + pe).astype(o_ref.dtype)
        # TODO(synk): nn.Dropout(p=0.1) omitted (eval-mode identity); a training
        # mask would use pltpu.prng_seed / pltpu.prng_random_bits here.

    return kernel


def positional_encoding(x, *, seq_tile=None, vmem_budget_bytes=24 * 1024 * 1024):
    """x: (seq_len, batch, d_model) -> same shape, x + pe[:seq_len] (dropout = identity)."""
    S, B, D = x.shape
    if D % 2:
        raise ValueError("d_model must be even (same limitation as the PyTorch module).")
    BD = B * D
    itemsize = jnp.dtype(x.dtype).itemsize

    if seq_tile is None:
        # Double-buffered per-step footprint ~= 2*x_tile + 2*out_tile
        #   = 4 * seq_tile * BD * itemsize.  Keep it inside the scoped-VMEM budget.
        budget_rows = max(1, vmem_budget_bytes // (4 * BD * itemsize))
        # Aim for >=4 grid steps when S allows so the "parallel" axis can shard
        # across both v7x TensorCores.
        target_rows = max(1, (S + 3) // 4)
        seq_tile = max(8, (min(budget_rows, target_rows) // 8) * 8)
    if seq_tile >= S:
        seq_tile = S  # single full-axis block: always layout-legal

    grid = (pl.cdiv(S, seq_tile),)

    cost = pl.CostEstimate(
        flops=2 * S * BD,                        # broadcast add + angle FMA
        transcendentals=S * BD,                  # one sin per element (exp is per-lane)
        bytes_accessed=2 * S * BD * itemsize,    # read x + write out; no table traffic
    )

    y2d = pl.pallas_call(
        _make_pe_add_kernel(D),
        out_shape=jax.ShapeDtypeStruct((S, BD), x.dtype),
        grid=grid,
        in_specs=[pl.BlockSpec((seq_tile, BD), lambda i: (i, 0))],
        out_specs=pl.BlockSpec((seq_tile, BD), lambda i: (i, 0)),
        input_output_aliases={0: 0},             # donate x's buffer to the output
        cost_estimate=cost,
        compiler_params=pltpu.CompilerParams(
            dimension_semantics=("parallel",),   # independent sequence chunks
            vmem_limit_bytes=32 * 1024 * 1024,   # raises v5e's 16 MiB default scoped VMEM
        ),
    )(x.reshape(S, BD))
    return y2d.reshape(S, B, D)


def _reference(x):
    """Pure-JAX mirror of the PyTorch module (dropout in eval mode)."""
    S, _, D = x.shape
    position = jnp.arange(S, dtype=jnp.float32)[:, None]
    div_term = jnp.exp(jnp.arange(0, D, 2, dtype=jnp.float32) * (-math.log(10000.0) / D))
    angles = position * div_term
    pe = jnp.zeros((S, D), jnp.float32)
    pe = pe.at[:, 0::2].set(jnp.sin(angles))
    pe = pe.at[:, 1::2].set(jnp.cos(angles))
    return x + pe[:, None, :].astype(x.dtype)


if __name__ == "__main__":
    # Small shapes implied by the forward: (seq_len, batch, d_model).
    S, B, D = 8, 2, 128   # D a multiple of 128 keeps every vreg lane-dense
    x = jax.random.normal(jax.random.PRNGKey(0), (S, B, D), dtype=jnp.float32)

    out = jax.block_until_ready(positional_encoding(x))
    assert out.shape == (S, B, D), out.shape
    assert bool(jnp.all(jnp.isfinite(out)))
    assert bool(jnp.allclose(out, _reference(x), rtol=1e-5, atol=1e-5))

    # Multi-grid-step check: seq_tile=8 < S exercises the per-step position offset.
    S2 = 24
    x2 = jax.random.normal(jax.random.PRNGKey(1), (S2, B, D), dtype=jnp.float32)
    out2 = jax.block_until_ready(positional_encoding(x2, seq_tile=8))
    assert bool(jnp.allclose(out2, _reference(x2), rtol=1e-5, atol=1e-5))

    print("KERNEL_OK")
</pallas_src>

<mosaic_0001>
module attributes {stable_mosaic.version = 11 : i64} {
  func.func @kernel(%arg0: i32, %arg1: memref<8x256xf32, #tpu.memory_space<vmem>>, %arg2: memref<8x256xf32, #tpu.memory_space<vmem>>) attributes {dimension_semantics = [#tpu.dimension_semantics<parallel>], iteration_bounds = array<i64: 1>, scalar_prefetch = 0 : i64, scratch_operands = 0 : i64, tpu.core_type = #tpu.core_type<tc>, window_params = [{transform_indices = @transform_0, window_bounds = array<i64: 8, 256>}, {transform_indices = @transform_1, window_bounds = array<i64: 8, 256>}]} {
    %0 = tpu.iota {dimensions = array<i32: 1>} : vector<1x256xi32>
    %1 = arith.sitofp %0 : vector<1x256xi32> to vector<1x256xf32>
    %cst = arith.constant 1.280000e+02 : f32
    %2 = vector.broadcast %cst : f32 to vector<1x256xf32>
    %3 = arith.divf %1, %2 : vector<1x256xf32>
    %4 = math.floor %3 : vector<1x256xf32>
    %cst_0 = arith.constant 1.280000e+02 : f32
    %5 = vector.broadcast %cst_0 : f32 to vector<1x256xf32>
    %6 = arith.mulf %4, %5 : vector<1x256xf32>
    %7 = arith.subf %1, %6 : vector<1x256xf32>
    %cst_1 = arith.constant 5.000000e-01 : f32
    %8 = vector.broadcast %cst_1 : f32 to vector<1x256xf32>
    %9 = arith.mulf %7, %8 : vector<1x256xf32>
    %10 = math.floor %9 : vector<1x256xf32>
    %cst_2 = arith.constant 2.000000e+00 : f32
    %11 = vector.broadcast %cst_2 : f32 to vector<1x256xf32>
    %12 = arith.mulf %10, %11 : vector<1x256xf32>
    %13 = arith.subf %7, %12 : vector<1x256xf32>
    %14 = arith.subf %7, %13 : vector<1x256xf32>
    %cst_3 = arith.constant -0.0719557852 : f32
    %15 = vector.broadcast %cst_3 : f32 to vector<1x256xf32>
    %16 = arith.mulf %14, %15 : vector<1x256xf32>
    %17 = math.exp %16 : vector<1x256xf32>
    %cst_4 = arith.constant 1.57079637 : f32
    %18 = vector.broadcast %cst_4 : f32 to vector<1x256xf32>
    %19 = arith.mulf %13, %18 : vector<1x256xf32>
    %c8_i32 = arith.constant 8 : i32
    %20 = arith.muli %arg0, %c8_i32 : i32
    %21 = tpu.iota {dimensions = array<i32: 0>} : vector<8x1xi32>
    %22 = vector.broadcast %20 : i32 to vector<8x1xi32>
    %23 = arith.addi %22, %21 : vector<8x1xi32>
    %24 = arith.sitofp %23 : vector<8x1xi32> to vector<8x1xf32>
    %25 = vector.broadcast %24 : vector<8x1xf32> to vector<8x256xf32>
    %26 = vector.broadcast %17 : vector<1x256xf32> to vector<8x256xf32>
    %27 = arith.mulf %25, %26 : vector<8x256xf32>
    %28 = vector.broadcast %19 : vector<1x256xf32> to vector<8x256xf32>
    %29 = arith.addf %27, %28 : vector<8x256xf32>
    %30 = math.sin %29 : vector<8x256xf32>
    %c0 = arith.constant 0 : index
    %c0_5 = arith.constant 0 : index
    %31 = vector.load %arg1[%c0, %c0_5] : memref<8x256xf32, #tpu.memory_space<vmem>>, vector<8x256xf32>
    %32 = arith.addf %31, %30 : vector<8x256xf32>
    %c0_6 = arith.constant 0 : index
    %c0_7 = arith.constant 0 : index
    %33 = vector.load %arg2[%c0_6, %c0_7] : memref<8x256xf32, #tpu.memory_space<vmem>>, vector<8x256xf32>
    tpu.vector_store %arg2[%c0_6, %c0_7], %32 {strides = array<i32>} : memref<8x256xf32, #tpu.memory_space<vmem>>, vector<8x256xf32>,
    return
  }
  func.func @transform_0(%arg0: i32) -> (i32, i32) {
    %c0_i32 = arith.constant 0 : i32
    %c0_i32_0 = arith.constant 0 : i32
    return %arg0, %c0_i32 : i32, i32
  }
  func.func @transform_1(%arg0: i32) -> (i32, i32) {
    %c0_i32 = arith.constant 0 : i32
    %c0_i32_0 = arith.constant 0 : i32
    return %arg0, %c0_i32 : i32, i32
  }
}

</mosaic_0001>

<llo_original>
// kernel: tpu_custom_call.1
$region0: #{tpu_custom_call.1}
  #allocation0 [shape = 'u32[]', space=smem, size = 0x4, offset = 0x4, fixed_abs, tag = 'smem constant byte address 0x4 - core index']
  #allocation1 [shape = 'u32[144,128]{1,0:T(1,128)}', space=vmem, size = 0x12000, scoped, tag = 'internal scratch']
  %s0 = inlined_call_operand.hbm [shape: f32[8,256], index: 0, kind: input, shape index: {}, may-alias: {0,1}]
  %s1 = inlined_call_operand.hbm [shape: f32[8,256], index: 1, kind: output, shape index: {}, may-alias: {0,1}]
  %s2 = sld [smem:[#allocation0]]
  $region18: #{tpu_custom_call.1} parent=0
    _
  %s4 = ssub.s32 1, %s2
  %s5 = scalar_select 0, %s4, %s2
  $region1: #{tpu_custom_call.1} parent=0
    #allocation2 [shape = 'u8[8192]{0}', space=vmem, size = 0x2000, scoped, tag = 'input window, operand 0, single buffered']
    #allocation3 [shape = 's32[1]{0}', space=sflag, size = 0x4, scoped, tag = 'scoped memory for tpu_custom_call.1']
    #allocation4 [shape = 's32[1]{0}', space=sflag, size = 0x4, scoped, tag = 'scoped memory for tpu_custom_call.1']
    #allocation5 [shape = 'u8[8192]{0}', space=vmem, size = 0x2000, scoped, tag = 'output window, operand 0, single buffered']
    %6 = vsyncpa [#allocation3], 0
    %7 = vsyncpa [#allocation4], 0
    // Predicated region
    $region2: #{tpu_custom_call.1} parent=1 // pred_check
      _
    $region3: #{tpu_custom_call.1} parent=1 // pred_check_branch
      %9 = sbr.rel (0) target = $region5
    $region4: #{tpu_custom_call.1} parent=1 // pred_region
      %s11 = ssub.s32 256, 256
      %12 = vsyncadd [#allocation3], %s11
      %s14 = sshll.u32 [#allocation2], 4
      %s15 = int_to_ptr.vmem [resolvable:$true] %s14
      %17 = dma.hbm_to_vmem [thread:$0]  %s0, 256, %s15, [#allocation3]
    $region5: #{tpu_custom_call.1} parent=1 // pred_fallthru
      _
    // Predicated region
    $region6: #{tpu_custom_call.1} parent=1 // pred_check
      _
    $region7: #{tpu_custom_call.1} parent=1 // pred_check_branch
      %19 = sbr.rel (0) target = $region9
    $region8: #{tpu_custom_call.1} parent=1 // pred_region
      %20 = dma.done [#allocation3], 256
    $region9: #{tpu_custom_call.1} parent=1 // pred_fallthru
      _
    %v21 = vlaneseq
    %v22 = vand.u32 %v21, 127
    %v23 = vadd.s32 %v22, 128
    %v24 = vcvt.s32.f32 %v22
    %v25 = vcvt.s32.f32 %v23
    %v26 = vrcp.pop 128.0
    %v27 = vmul.f32 %v24, %v26
    %v28 = vmul.f32 %v25, %v26
    %v29 = vfloor.f32 %v27
    %v30 = vfloor.f32 %v28
    %v31 = vmul.f32 %v29, 128.0
    %v32 = vmul.f32 %v30, 128.0
    %v33 = vsub.f32 %v24, %v31
    %v34 = vsub.f32 %v25, %v32
    %v35 = vmul.f32 %v33, 0.5
    %v36 = vmul.f32 %v34, 0.5
    %v37 = vfloor.f32 %v35
    %v38 = vfloor.f32 %v36
    %v39 = vmul.f32 %v37, 2.0
    %v40 = vmul.f32 %v38, 2.0
    %v41 = vsub.f32 %v33, %v39
    %v42 = vsub.f32 %v34, %v40
    %v43 = vsub.f32 %v33, %v41
    %v44 = vsub.f32 %v34, %v42
    %v45 = vmul.f32 %v43, -0.071955785
    %v46 = vmul.f32 %v44, -0.071955785
    %v47 = vmul.f32 %v45, 1.442695
    %v48 = vpow.pop %v47
    %v49 = vmul.f32 %v46, 1.442695
    %v50 = vpow.pop %v49
    %v51 = vmul.f32 %v41, 1.5707964
    %v52 = vmul.f32 %v42, 1.5707964
    %s53 = smul.u32 0, 8
    %v54 = vlaneseq
    %v55 = vshrl.u32 %v54, 7
    %v56 = vstv %s53
    %v57 = vadd.s32 %v56, %v55
    %v58 = vcvt.s32.f32 %v57
    %v59 = vmul.f32 %v58, %v48
    %v60 = vmul.f32 %v58, %v50
    %v61 = vadd.f32 %v59, %v51
    %v62 = vadd.f32 %v60, %v52
    %v63 = vand.u32 2147483647, %v61
    %vm64 = vcmp.le.f32.partialorder %v63, 0.7853982
    %vm65 = vcmp.lt.s32.totalorder %v61, 0
    %v66 = vand.u32 %v61, 2139095040
    %v67 = vshrl.u32 %v66, 23
    %v68 = vsub.s32 %v67, 127
    %v69 = vand.u32 2147483647, %v61
    %v70 = vand.u32 %v69, 8388607
    %v71 = vor.u32 %v70, 8388608
    %v72 = vsub.s32 0, %v71
    %v73 = vadd.s32 %v68, 1
    %vm74 = vcmp.gt.s32.totalorder %v73, 0
    %v75 = vsel %vm74, %v73, 0
    %v76 = vshrl.u32 %v75, 5
    %v77 = vand.u32 %v75, 31
    %v78 = vsub.s32 32, %v77
    %v79 = vshrl.u32 683565275, %v78
    %v80 = vshll.u32 683565275, %v77
    %v81 = vshrl.u32 2475754826, %v78
    %v82 = vor.u32 %v80, %v81
    %v83 = vshll.u32 2475754826, %v77
    %v84 = vshrl.u32 2131351028, %v78
    %v85 = vor.u32 %v83, %v84
    %v86 = vshll.u32 2131351028, %v77
    %v87 = vshrl.u32 2102212464, %v78
    %v88 = vor.u32 %v86, %v87
    %v89 = vshll.u32 2102212464, %v77
    %v90 = vshrl.u32 920167782, %v78
    %v91 = vor.u32 %v89, %v90
    %v92 = vshll.u32 920167782, %v77
    %v93 = vshrl.u32 1326507024, %v78
    %v94 = vor.u32 %v92, %v93
    %vm95 = vcmp.lt.s32.totalorder %v76, 1
    %vm96 = vcmp.lt.s32.totalorder %v76, 2
    %vm97 = vcmp.lt.s32.totalorder %v76, 3
    %vm98 = vcmp.lt.s32.totalorder %v76, 4
    %v99 = vsel %vm95, %v79, %v82
    %v100 = vsel %vm98, %v88, 2102212464
    %v101 = vsel %vm97, %v85, %v100
    %v102 = vsel %vm96, %v99, %v101
    %v103 = vsel %vm95, %v82, %v85
    %v104 = vsel %vm98, %v91, 920167782
    %v105 = vsel %vm97, %v88, %v104
    %v106 = vsel %vm96, %v103, %v105
    %v107 = vsel %vm95, %v85, %v88
    %v108 = vsel %vm98, %v94, 1326507024
    %v109 = vsel %vm97, %v91, %v108
    %v110 = vsel %vm96, %v107, %v109
    %v111 = vshll.u32 %v71, 8
    %v112 = vmul.u32.u64.compose %v111, %v110
    %v113 = vextract.low.u32 %v112
    %v114 = vextract.high.u32 %v112
    %v115 = vmul.u32.u64.compose %v111, %v106
    %v116 = vextract.low.u32 %v115
    %v117 = vextract.high.u32 %v115
    %v118 = vmul.u32 %v111, %v102
    %v119 = vadd.s32 %v114, %v116
    %vm120 = vc.u32 %v114, %v116
    %v121 = vadd.s32 %v117, 1
    %v122 = vsel %vm120, %v121, %v117
    %v123 = vadd.s32 %v118, %v122
    %v124 = vadd.s32 %v123, 536870912
    %v125 = vshrl.u32 %v124, 30
    %v126 = vshll.u32 %v125, 30
    %v127 = vsub.s32 %v123, %v126
    %vm128 = vcmp.lt.s32.totalorder %v127, 0
    %v129 = vsub.s32 0, %v127
    %v130 = vsel %vm128, %v129, %v127
    %v131 = vclz %v130
    %v132 = vsub.s32 %v131, 2
    %vm133 = vcmp.gt.s32.totalorder 0, %v132
    %v134 = vsel %vm133, 0, %v132
    %v135 = vsub.s32 32, %v134
    %v136 = vshll.u32 %v127, %v134
    %v137 = vshrl.u32 %v119, %v135
    %v138 = vor.u32 %v136, %v137
    %v139 = vsub.s32 4294967266, %v134
    %v140 = vadd.s32 %v139, 127
    %v141 = vshll.u32 %v140, 23
    %v142 = vor.u32 4788187, %v141
    %v143 = vand.u32 2147483647, %v142
    %v145 = vcvt.s32.f32 %v138
    %v146 = vmul.f32 %v145, %v143
    %v147 = vxor.u32 %v146, 2147483648
    %v148 = vsel %vm65, %v147, %v146
    %v149 = vsub.s32 4, %v125
    %v150 = vsel %vm65, %v149, %v125
    %v151 = vsel %vm64, %v61, %v148
    %v152 = vsel %vm64, 0, %v150
    %v153 = vcosq.f32.pop %v151
    %v154 = vsinq.f32.pop %v151
    %vm155 = vweird.f32 %v61
    %v156 = vadd.s32 %v152, 3
    %v157 = vand.u32 %v156, 3
    %vm158 = vcmp.lt.s32.totalorder %v157, 2
    %vm159 = vcmp.eq.s32.totalorder %v157, 0
    %v160 = vxor.u32 %v154, 2147483648
    %v161 = vsel %vm159, %v153, %v160
    %vm162 = vcmp.eq.s32.totalorder %v157, 2
    %v163 = vxor.u32 %v153, 2147483648
    %v164 = vsel %vm162, %v163, %v154
    %v165 = vsel %vm158, %v161, %v164
    %v166 = vsel %vm155, nan, %v165
    %v167 = vand.u32 2147483647, %v62
    %vm168 = vcmp.le.f32.partialorder %v167, 0.7853982
    %vm169 = vcmp.lt.s32.totalorder %v62, 0
    %v170 = vand.u32 %v62, 2139095040
    %v171 = vshrl.u32 %v170, 23
    %v172 = vsub.s32 %v171, 127
    %v173 = vand.u32 2147483647, %v62
    %v174 = vand.u32 %v173, 8388607
    %v175 = vor.u32 %v174, 8388608
    %v176 = vsub.s32 0, %v175
    %v177 = vadd.s32 %v172, 1
    %vm178 = vcmp.gt.s32.totalorder %v177, 0
    %v179 = vsel %vm178, %v177, 0
    %v180 = vshrl.u32 %v179, 5
    %v181 = vand.u32 %v179, 31
    %v182 = vsub.s32 32, %v181
    %v183 = vshrl.u32 683565275, %v182
    %v184 = vshll.u32 683565275, %v181
    %v185 = vshrl.u32 2475754826, %v182
    %v186 = vor.u32 %v184, %v185
    %v187 = vshll.u32 2475754826, %v181
    %v188 = vshrl.u32 2131351028, %v182
    %v189 = vor.u32 %v187, %v188
    %v190 = vshll.u32 2131351028, %v181
    %v191 = vshrl.u32 2102212464, %v182
    %v192 = vor.u32 %v190, %v191
    %v193 = vshll.u32 2102212464, %v181
    %v194 = vshrl.u32 920167782, %v182
    %v195 = vor.u32 %v193, %v194
    %v196 = vshll.u32 920167782, %v181
    %v197 = vshrl.u32 1326507024, %v182
    %v198 = vor.u32 %v196, %v197
    %vm199 = vcmp.lt.s32.totalorder %v180, 1
    %vm200 = vcmp.lt.s32.totalorder %v180, 2
    %vm201 = vcmp.lt.s32.totalorder %v180, 3
    %vm202 = vcmp.lt.s32.totalorder %v180, 4
    %v203 = vsel %vm199, %v183, %v186
    %v204 = vsel %vm202, %v192, 2102212464
    %v205 = vsel %vm201, %v189, %v204
    %v206 = vsel %vm200, %v203, %v205
    %v207 = vsel %vm199, %v186, %v189
    %v208 = vsel %vm202, %v195, 920167782
    %v209 = vsel %vm201, %v192, %v208
    %v210 = vsel %vm200, %v207, %v209
    %v211 = vsel %vm199, %v189, %v192
    %v212 = vsel %vm202, %v198, 1326507024
    %v213 = vsel %vm201, %v195, %v212
    %v214 = vsel %vm200, %v211, %v213
    %v215 = vshll.u32 %v175, 8
    %v216 = vmul.u32.u64.compose %v215, %v214
    %v217 = vextract.low.u32 %v216
    %v218 = vextract.high.u32 %v216
    %v219 = vmul.u32.u64.compose %v215, %v210
    %v220 = vextract.low.u32 %v219
    %v221 = vextract.high.u32 %v219
    %v222 = vmul.u32 %v215, %v206
    %v223 = vadd.s32 %v218, %v220
    %vm224 = vc.u32 %v218, %v220
    %v225 = vadd.s32 %v221, 1
    %v226 = vsel %vm224, %v225, %v221
    %v227 = vadd.s32 %v222, %v226
    %v228 = vadd.s32 %v227, 536870912
    %v229 = vshrl.u32 %v228, 30
    %v230 = vshll.u32 %v229, 30
    %v231 = vsub.s32 %v227, %v230
    %vm232 = vcmp.lt.s32.totalorder %v231, 0
    %v233 = vsub.s32 0, %v231
    %v234 = vsel %vm232, %v233, %v231
    %v235 = vclz %v234
    %v236 = vsub.s32 %v235, 2
    %vm237 = vcmp.gt.s32.totalorder 0, %v236
    %v238 = vsel %vm237, 0, %v236
    %v239 = vsub.s32 32, %v238
    %v240 = vshll.u32 %v231, %v238
    %v241 = vshrl.u32 %v223, %v239
    %v242 = vor.u32 %v240, %v241
    %v243 = vsub.s32 4294967266, %v238
    %v244 = vadd.s32 %v243, 127
    %v245 = vshll.u32 %v244, 23
    %v246 = vor.u32 4788187, %v245
    %v247 = vand.u32 2147483647, %v246
    %v249 = vcvt.s32.f32 %v242
    %v250 = vmul.f32 %v249, %v247
    %v251 = vxor.u32 %v250, 2147483648
    %v252 = vsel %vm169, %v251, %v250
    %v253 = vsub.s32 4, %v229
    %v254 = vsel %vm169, %v253, %v229
    %v255 = vsel %vm168, %v62, %v252
    %v256 = vsel %vm168, 0, %v254
    %v257 = vcosq.f32.pop %v255
    %v258 = vsinq.f32.pop %v255
    %vm259 = vweird.f32 %v62
    %v260 = vadd.s32 %v256, 3
    %v261 = vand.u32 %v260, 3
    %vm262 = vcmp.lt.s32.totalorder %v261, 2
    %vm263 = vcmp.eq.s32.totalorder %v261, 0
    %v264 = vxor.u32 %v258, 2147483648
    %v265 = vsel %vm263, %v257, %v264
    %vm266 = vcmp.eq.s32.totalorder %v261, 2
    %v267 = vxor.u32 %v257, 2147483648
    %v268 = vsel %vm266, %v267, %v258
    %v269 = vsel %vm262, %v265, %v268
    %v270 = vsel %vm259, nan, %v269
    %v271 = vld [vmem:[#allocation2] sm:$0xff]
    %v272 = vld [vmem:[#allocation2 + $0x8] sm:$0xff]
    %v273 = vadd.f32 %v271, %v166
    %v274 = vadd.f32 %v272, %v270
    %275 = vst [vmem:[#allocation5] sm:$0xff] %v273
    %276 = vst [vmem:[#allocation5 + $0x8] sm:$0xff] %v274
    // Predicated region
    $region10: #{tpu_custom_call.1} parent=1 // pred_check
      _
    $region11: #{tpu_custom_call.1} parent=1 // pred_check_branch
      %278 = sbr.rel (0) target = $region13
    $region12: #{tpu_custom_call.1} parent=1 // pred_region
      %s280 = ssub.s32 256, 256
      %281 = vsyncadd [#allocation4], %s280
      %s283 = sshll.u32 [#allocation5], 4
      %s284 = int_to_ptr.vmem [resolvable:$true] %s283
      %286 = dma.vmem_to_hbm [thread:$0]  %s284, 256, %s1, [#allocation4]
    $region13: #{tpu_custom_call.1} parent=1 // pred_fallthru
      _
    // Predicated region
    $region14: #{tpu_custom_call.1} parent=1 // pred_check
      _
    $region15: #{tpu_custom_call.1} parent=1 // pred_check_branch
      %288 = sbr.rel (0) target = $region17
    $region16: #{tpu_custom_call.1} parent=1 // pred_region
      %289 = dma.done [#allocation4], 256
    $region17: #{tpu_custom_call.1} parent=1 // pred_fallthru
      _
    %290 = vsyncpa [#allocation3], 1
    %291 = vsyncpa [#allocation4], 1

</llo_original>
